<compile_context>
chip_gen: v5e
topology: v5e:2x2
jax: 0.10.0
libtpu: 0.0.40
codegen_flags: <defaults>
</compile_context>

<pallas_src>
import jax
import jax.numpy as jnp
from jax.experimental import pallas as pl
from jax.experimental.pallas import tpu as pltpu


def _vae_kernel(z_ref, w_ref, noise_ref, samp_ref, mu_ref, lsq_ref):
    # z_ref:     (block_b, n_in, tile_t)
    # w_ref:     (2*n_out, n_in)              -- constant index_map -> cached in VMEM
    # noise_ref: (1, block_b, n_out, tile_t)
    # outputs:   (1, block_b, n_out, tile_t)
    n_out = mu_ref.shape[2]
    w = w_ref[...]
    block_b = z_ref.shape[0]
    for b in range(block_b):                 # small static unroll (<= 8)
        # 1x1 Conv1d == (2*n_out, n_in) @ (n_in, tile_t); f32 MXU accumulation,
        # T stays on the lanes so every store is lane-dense.
        lin = jnp.dot(w, z_ref[b],
                      preferred_element_type=jnp.float32,
                      precision=jax.lax.Precision.HIGHEST)
        mu = lin[:n_out, :]                  # sublane slice (n_out % 8 == 0 typical)
        lsq = lin[n_out:, :]
        sigma = jnp.exp(0.5 * lsq)           # EUP transcendental
        # reparameterization trick: samples = randn * sigma + mu
        samp_ref[0, b] = noise_ref[0, b] * sigma + mu
        mu_ref[0, b] = mu
        lsq_ref[0, b] = lsq


def _choose_blocks(B, L, n_in, n_out, T, tile_t):
    """Pick (block_b, tile_t) so each grid step moves a few MB (amortizing the
    ~0.35us per-step overhead) while the double-buffered VMEM footprint stays
    far below the scoped VMEM limit on every TPU generation."""
    lane = 128
    if tile_t >= T:
        tile_t = T                                    # single full-dim T tile
    else:
        tile_t = max(lane, (tile_t // lane) * lane)   # lane-aligned, masked tail

    # Per-step bytes for one batch element: z + noise + 3 outputs, all f32.
    def step_bytes(bb, tt):
        return 4 * bb * tt * (n_in + 4 * n_out)

    budget = 6 * 1024 * 1024                 # ~12 MiB when double-buffered
    while tile_t > lane and step_bytes(1, tile_t) > budget:
        tile_t = max(lane, ((tile_t // 2) // lane) * lane)

    block_b = max(1, min(B, 8, budget // max(step_bytes(1, tile_t), 1)))

    # Keep >=2 grid steps whenever possible so both v7x TensorCores get work.
    b_blocks = pl.cdiv(B, block_b)
    t_tiles = pl.cdiv(T, tile_t)
    if L * b_blocks * t_tiles < 2 and block_b > 1:
        block_b = pl.cdiv(B, 2)
        b_blocks = pl.cdiv(B, block_b)
    return block_b, b_blocks, tile_t, t_tiles


def vae_forward(z, w, noise, *, n_out, n_sam_per_datapoint=1, tile_t=4096):
    """Pallas TPU forward of the PyTorch VAE module.

    z:     (B, n_in, T) float32
    w:     (2*n_out, n_in) float32   -- Conv1d(n_in, 2*n_out, 1, bias=False) weight
    noise: (B*L, n_out, T) float32   -- stands in for torch.randn_like(mu)

    Returns (samples, mu, log_sigma_sq), each (B*L, n_out, T) float32.
    sigma_sq == exp(log_sigma_sq); it is intentionally not materialized by the
    kernel (trivially recomputable, saves ~19% of HBM traffic).
    """
    L = n_sam_per_datapoint
    B, n_in, T = z.shape
    BL = B * L
    assert w.shape == (2 * n_out, n_in)
    assert noise.shape == (BL, n_out, T)

    # (L, B, n_out, T) view; merging/splitting leading dims is a free reshape.
    noise4 = noise.reshape(L, B, n_out, T)

    block_b, b_blocks, tile_t, t_tiles = _choose_blocks(
        B, L, n_in, n_out, T, tile_t)
    grid = (L, b_blocks, t_tiles)

    out_shape4 = jax.ShapeDtypeStruct((L, B, n_out, T), jnp.float32)
    io_spec = pl.BlockSpec((1, block_b, n_out, tile_t),
                           lambda l, b, t: (l, b, 0, t))

    cost = pl.CostEstimate(
        flops=2 * (2 * n_out) * n_in * T * BL,
        transcendentals=n_out * T * BL,
        bytes_accessed=4 * (BL * T * (n_in + 4 * n_out) + 2 * n_out * n_in),
    )

    samples, mu, log_sigma_sq = pl.pallas_call(
        _vae_kernel,
        out_shape=(out_shape4, out_shape4, out_shape4),
        grid=grid,
        in_specs=[
            # z is indexed by (b, t) only -> L>1 reuses it with zero extra HBM traffic.
            pl.BlockSpec((block_b, n_in, tile_t), lambda l, b, t: (b, 0, t)),
            pl.BlockSpec((2 * n_out, n_in), lambda l, b, t: (0, 0)),  # full weight, cached
            io_spec,                                                   # noise tile
        ],
        out_specs=(io_spec, io_spec, io_spec),
        compiler_params=pltpu.CompilerParams(
            dimension_semantics=("parallel", "parallel", "parallel")),
        cost_estimate=cost,
    )(z, w, noise4)

    samples = samples.reshape(BL, n_out, T)
    mu = mu.reshape(BL, n_out, T)
    log_sigma_sq = log_sigma_sq.reshape(BL, n_out, T)
    return samples, mu, log_sigma_sq


if __name__ == "__main__":
    B, n_in, n_out, T = 2, 16, 64, 64         # small demo shapes

    key = jax.random.PRNGKey(0)
    k_z, k_w, k_n, k_n2 = jax.random.split(key, 4)

    z = jax.random.normal(k_z, (B, n_in, T), dtype=jnp.float32)
    # xavier (glorot) uniform init for Conv1d(n_in, 2*n_out, 1, bias=False)
    bound = (6.0 / (n_in + 2 * n_out)) ** 0.5
    w = jax.random.uniform(k_w, (2 * n_out, n_in),
                           minval=-bound, maxval=bound, dtype=jnp.float32)

    # pure-JAX reference (same math as the PyTorch forward)
    lin_ref = jnp.einsum('oc,bct->bot', w, z)
    mu_r, lsq_r = lin_ref[:, :n_out], lin_ref[:, n_out:]
    sigma_r = jnp.exp(0.5 * lsq_r)

    # --- L = 1 ---
    noise = jax.random.normal(k_n, (B, n_out, T), dtype=jnp.float32)
    samples, mu, lsq = vae_forward(z, w, noise, n_out=n_out)
    jax.block_until_ready(samples)
    sigma_sq = jnp.exp(lsq)                    # consumer-side sigma_sq
    assert jnp.allclose(samples, noise * sigma_r + mu_r, atol=1e-5, rtol=1e-5)
    assert jnp.allclose(mu, mu_r, atol=1e-5, rtol=1e-5)
    assert jnp.allclose(lsq, lsq_r, atol=1e-5, rtol=1e-5)
    assert jnp.allclose(sigma_sq, sigma_r * sigma_r, atol=1e-5, rtol=1e-5)

    # --- L = 2 (n_sam_per_datapoint > 1 path, no jnp.tile of z) ---
    L = 2
    noise2 = jax.random.normal(k_n2, (B * L, n_out, T), dtype=jnp.float32)
    s2, mu2, lsq2 = vae_forward(z, w, noise2, n_out=n_out, n_sam_per_datapoint=L)
    jax.block_until_ready(s2)
    mu_rep = jnp.tile(mu_r, (L, 1, 1))
    lsq_rep = jnp.tile(lsq_r, (L, 1, 1))
    assert jnp.allclose(s2, noise2 * jnp.exp(0.5 * lsq_rep) + mu_rep,
                        atol=1e-5, rtol=1e-5)
    assert jnp.allclose(mu2, mu_rep, atol=1e-5, rtol=1e-5)
    assert jnp.allclose(lsq2, lsq_rep, atol=1e-5, rtol=1e-5)

    # --- non-dividing T (masked tail blocks, no pad/slice in the wrapper) ---
    T3 = 192
    z3 = jax.random.normal(k_z, (B, n_in, T3), dtype=jnp.float32)
    noise3 = jax.random.normal(k_n, (B, n_out, T3), dtype=jnp.float32)
    s3, mu3, lsq3 = vae_forward(z3, w, noise3, n_out=n_out, tile_t=128)
    jax.block_until_ready(s3)
    lin3 = jnp.einsum('oc,bct->bot', w, z3)
    mu3_r, lsq3_r = lin3[:, :n_out], lin3[:, n_out:]
    assert jnp.allclose(s3, noise3 * jnp.exp(0.5 * lsq3_r) + mu3_r,
                        atol=1e-5, rtol=1e-5)
    assert jnp.allclose(mu3, mu3_r, atol=1e-5, rtol=1e-5)
    assert jnp.allclose(lsq3, lsq3_r, atol=1e-5, rtol=1e-5)

    print("KERNEL_OK")
</pallas_src>

<mosaic_0001>
module attributes {stable_mosaic.version = 11 : i64} {
  func.func @_vae_kernel(%arg0: i32, %arg1: i32, %arg2: i32, %arg3: memref<1x16x64xf32, #tpu.memory_space<vmem>>, %arg4: memref<128x16xf32, #tpu.memory_space<vmem>>, %arg5: memref<1x1x64x64xf32, #tpu.memory_space<vmem>>, %arg6: memref<1x1x64x64xf32, #tpu.memory_space<vmem>>, %arg7: memref<1x1x64x64xf32, #tpu.memory_space<vmem>>, %arg8: memref<1x1x64x64xf32, #tpu.memory_space<vmem>>) attributes {dimension_semantics = [#tpu.dimension_semantics<parallel>, #tpu.dimension_semantics<parallel>, #tpu.dimension_semantics<parallel>], iteration_bounds = array<i64: 1, 2, 1>, scalar_prefetch = 0 : i64, scratch_operands = 0 : i64, tpu.core_type = #tpu.core_type<tc>, window_params = [{transform_indices = @transform_0, window_bounds = array<i64: 1, 16, 64>}, {pipeline_mode = #tpu.pipeline_mode<synchronous>, transform_indices = @transform_1, window_bounds = array<i64: 128, 16>}, {transform_indices = @transform_2, window_bounds = array<i64: 1, 1, 64, 64>}, {transform_indices = @transform_3, window_bounds = array<i64: 1, 1, 64, 64>}, {transform_indices = @transform_4, window_bounds = array<i64: 1, 1, 64, 64>}, {transform_indices = @transform_5, window_bounds = array<i64: 1, 1, 64, 64>}]} {
    %c0 = arith.constant 0 : index
    %c0_0 = arith.constant 0 : index
    %0 = vector.load %arg4[%c0, %c0_0] : memref<128x16xf32, #tpu.memory_space<vmem>>, vector<128x16xf32>
    %c0_1 = arith.constant 0 : index
    %c0_2 = arith.constant 0 : index
    %c0_3 = arith.constant 0 : index
    %1 = vector.load %arg3[%c0_1, %c0_2, %c0_3] : memref<1x16x64xf32, #tpu.memory_space<vmem>>, vector<1x16x64xf32>
    %2 = vector.shape_cast %1 : vector<1x16x64xf32> to vector<16x64xf32>
    %cst = arith.constant dense<0.000000e+00> : vector<128x64xf32>
    %3 = tpu.matmul %0, %2, %cst {dimension_numbers = #tpu.dot_dimension_numbers<[1], [0], [0], [1], [0, 0, 1, 1], [], []>, precision = #tpu.contract_precision<fp32>} : vector<128x16xf32>, vector<16x64xf32>, vector<128x64xf32> -> vector<128x64xf32>
    %4 = vector.extract_strided_slice %3 {offsets = [0, 0], sizes = [64, 64], strides = [1, 1]} : vector<128x64xf32> to vector<64x64xf32>
    %5 = vector.extract_strided_slice %3 {offsets = [64, 0], sizes = [64, 64], strides = [1, 1]} : vector<128x64xf32> to vector<64x64xf32>
    %cst_4 = arith.constant 5.000000e-01 : f32
    %6 = vector.broadcast %cst_4 : f32 to vector<64x64xf32>
    %7 = arith.mulf %6, %5 : vector<64x64xf32>
    %8 = math.exp %7 : vector<64x64xf32>
    %c0_5 = arith.constant 0 : index
    %c0_6 = arith.constant 0 : index
    %c0_7 = arith.constant 0 : index
    %c0_8 = arith.constant 0 : index
    %9 = vector.load %arg5[%c0_5, %c0_6, %c0_7, %c0_8] : memref<1x1x64x64xf32, #tpu.memory_space<vmem>>, vector<1x1x64x64xf32>
    %10 = vector.shape_cast %9 : vector<1x1x64x64xf32> to vector<64x64xf32>
    %11 = arith.mulf %10, %8 : vector<64x64xf32>
    %12 = arith.addf %11, %4 : vector<64x64xf32>
    %c0_9 = arith.constant 0 : index
    %c0_10 = arith.constant 0 : index
    %c0_11 = arith.constant 0 : index
    %c0_12 = arith.constant 0 : index
    %13 = vector.load %arg6[%c0_9, %c0_10, %c0_11, %c0_12] : memref<1x1x64x64xf32, #tpu.memory_space<vmem>>, vector<1x1x64x64xf32>
    %14 = vector.shape_cast %13 : vector<1x1x64x64xf32> to vector<64x64xf32>
    %15 = vector.shape_cast %12 : vector<64x64xf32> to vector<1x1x64x64xf32>
    tpu.vector_store %arg6[%c0_9, %c0_10, %c0_11, %c0_12], %15 {strides = array<i32>} : memref<1x1x64x64xf32, #tpu.memory_space<vmem>>, vector<1x1x64x64xf32>,
    %c0_13 = arith.constant 0 : index
    %c0_14 = arith.constant 0 : index
    %c0_15 = arith.constant 0 : index
    %c0_16 = arith.constant 0 : index
    %16 = vector.load %arg7[%c0_13, %c0_14, %c0_15, %c0_16] : memref<1x1x64x64xf32, #tpu.memory_space<vmem>>, vector<1x1x64x64xf32>
    %17 = vector.shape_cast %16 : vector<1x1x64x64xf32> to vector<64x64xf32>
    %18 = vector.shape_cast %4 : vector<64x64xf32> to vector<1x1x64x64xf32>
    tpu.vector_store %arg7[%c0_13, %c0_14, %c0_15, %c0_16], %18 {strides = array<i32>} : memref<1x1x64x64xf32, #tpu.memory_space<vmem>>, vector<1x1x64x64xf32>,
    %c0_17 = arith.constant 0 : index
    %c0_18 = arith.constant 0 : index
    %c0_19 = arith.constant 0 : index
    %c0_20 = arith.constant 0 : index
    %19 = vector.load %arg8[%c0_17, %c0_18, %c0_19, %c0_20] : memref<1x1x64x64xf32, #tpu.memory_space<vmem>>, vector<1x1x64x64xf32>
    %20 = vector.shape_cast %19 : vector<1x1x64x64xf32> to vector<64x64xf32>
    %21 = vector.shape_cast %5 : vector<64x64xf32> to vector<1x1x64x64xf32>
    tpu.vector_store %arg8[%c0_17, %c0_18, %c0_19, %c0_20], %21 {strides = array<i32>} : memref<1x1x64x64xf32, #tpu.memory_space<vmem>>, vector<1x1x64x64xf32>,
    return
  }
  func.func @transform_0(%arg0: i32, %arg1: i32, %arg2: i32) -> (i32, i32, i32) {
    %c0_i32 = arith.constant 0 : i32
    %c0_i32_0 = arith.constant 0 : i32
    return %arg1, %c0_i32, %arg2 : i32, i32, i32
  }
  func.func @transform_1(%arg0: i32, %arg1: i32, %arg2: i32) -> (i32, i32) {
    %c0_i32 = arith.constant 0 : i32
    %c0_i32_0 = arith.constant 0 : i32
    %c0_i32_1 = arith.constant 0 : i32
    return %c0_i32, %c0_i32_0 : i32, i32
  }
  func.func @transform_2(%arg0: i32, %arg1: i32, %arg2: i32) -> (i32, i32, i32, i32) {
    %c0_i32 = arith.constant 0 : i32
    %c0_i32_0 = arith.constant 0 : i32
    return %arg0, %arg1, %c0_i32, %arg2 : i32, i32, i32, i32
  }
  func.func @transform_3(%arg0: i32, %arg1: i32, %arg2: i32) -> (i32, i32, i32, i32) {
    %c0_i32 = arith.constant 0 : i32
    %c0_i32_0 = arith.constant 0 : i32
    return %arg0, %arg1, %c0_i32, %arg2 : i32, i32, i32, i32
  }
  func.func @transform_4(%arg0: i32, %arg1: i32, %arg2: i32) -> (i32, i32, i32, i32) {
    %c0_i32 = arith.constant 0 : i32
    %c0_i32_0 = arith.constant 0 : i32
    return %arg0, %arg1, %c0_i32, %arg2 : i32, i32, i32, i32
  }
  func.func @transform_5(%arg0: i32, %arg1: i32, %arg2: i32) -> (i32, i32, i32, i32) {
    %c0_i32 = arith.constant 0 : i32
    %c0_i32_0 = arith.constant 0 : i32
    return %arg0, %arg1, %c0_i32, %arg2 : i32, i32, i32, i32
  }
}

</mosaic_0001>

<llo_original>
// kernel: tpu_custom_call.1
$region0: #{tpu_custom_call.1}
  #allocation0 [shape = 'u32[]', space=smem, size = 0x4, offset = 0x4, fixed_abs, tag = 'smem constant byte address 0x4 - core index']
  #allocation1 [shape = 'u32[72,128]{1,0:T(1,128)}', space=vmem, size = 0x9000, scoped, tag = 'internal scratch']
  %s0 = inlined_call_operand.hbm [shape: f32[2,16,64], index: 0, kind: input, shape index: {}]
  %s1 = inlined_call_operand.vmem [shape: f32[128,16], index: 1, kind: input, shape index: {}]
  %s2 = inlined_call_operand.vmem [shape: f32[1,2,64,64], index: 2, kind: input, shape index: {}]
  %s3 = inlined_call_operand.hbm [shape: f32[1,2,64,64], index: 3, kind: output, shape index: {0}]
  %s4 = inlined_call_operand.hbm [shape: f32[1,2,64,64], index: 4, kind: output, shape index: {1}]
  %s5 = inlined_call_operand.hbm [shape: f32[1,2,64,64], index: 5, kind: output, shape index: {2}]
  %6 = xla_tuple %s3, %s4, %s5
  %s7 = sld [smem:[#allocation0]]
  $region65: #{tpu_custom_call.1} parent=0
    _
  %s9 = ssub.s32 1, %s7
  %s10 = scalar_select 0, %s9, %s7
  $region1: #{tpu_custom_call.1} parent=0
    #allocation2 [shape = 'u8[16384]{0}', space=vmem, size = 0x4000, scoped, tag = 'input window, operand 0']
    #allocation3 [shape = 's32[2]{0}', space=sflag, size = 0x8, scoped, tag = 'scoped memory for tpu_custom_call.1']
    #allocation4 [shape = 's32[2]{0}', space=sflag, size = 0x8, scoped, tag = 'scoped memory for tpu_custom_call.1']
    #allocation5 [shape = 'u8[65536]{0}', space=vmem, size = 0x10000, scoped, tag = 'output window, operand 0']
    #allocation6 [shape = 'u8[65536]{0}', space=vmem, size = 0x10000, scoped, tag = 'output window, operand 1']
    #allocation7 [shape = 's32[2]{0}', space=sflag, size = 0x8, scoped, tag = 'scoped memory for tpu_custom_call.1']
    #allocation8 [shape = 'u8[65536]{0}', space=vmem, size = 0x10000, scoped, tag = 'output window, operand 2']
    %11 = vsyncpa [#allocation3], 0
    %s12 = scalar_lea.sflag [#allocation3], 1
    %13 = vsyncpa %s12, 0
    %14 = vsyncpa [#allocation4], 0
    %s15 = scalar_lea.sflag [#allocation4], 1
    %16 = vsyncpa %s15, 0
    %17 = vsyncpa [#allocation7], 0
    %s18 = scalar_lea.sflag [#allocation7], 1
    %19 = vsyncpa %s18, 0
    loop: start=0, step=1, limit=4
    $region2: #{tpu_custom_call.1} parent=1 // loop_pre_header
      _
    $region3: #{tpu_custom_call.1} parent=1 // loop_header
      %s21 = sphi 0, %s25
      %p22 = scmp.ge.s32.totalorder %s21, 4
      %s28 = sphi 0, %s47
      %s29 = sphi 0, %s43
      %s30 = sphi 0, %s39
      %s31 = sphi 0, %s28
      %s32 = sphi 0, %s29
      %s33 = sphi 0, %s30
      %s34 = sphi 0, %s31
      %s35 = sphi 0, %s32
      %s36 = sphi 0, %s33
      %s52 = sphi 0, %s54
      %s55 = sphi 0, %s52
      %s56 = sphi 0, %s55
      %s72 = sphi 0, %s56
      %s76 = sphi 0, %s76
      %s78 = sphi 0, %s76
      %s79 = sphi 0, %s78
      %s93 = sphi 0, %s79
      %s103 = sphi 0, %s105
      %s106 = sphi 0, %s103
      %s107 = sphi 0, %s106
      %s123 = sphi 0, %s107
      %s133 = sphi 0, %s135
      %s136 = sphi 0, %s133
      %s137 = sphi 0, %s136
      %s153 = sphi 0, %s137
      %s163 = sphi 0, %s165
      %s166 = sphi 0, %s163
      %s167 = sphi 0, %s166
      %s183 = sphi 0, %s167
      %s193 = sphi 0, %s195
      %s196 = sphi 0, %s193
      %s197 = sphi 0, %s196
      %s213 = sphi 0, %s197
    $region4: #{tpu_custom_call.1} parent=1 // loop_header_branch
      %24 = sbr.rel (%p22) target = $region8
    $region5: #{tpu_custom_call.1} parent=1 // loop_body
      %s26 = ssub.s32 %s21, 1
      %s27 = ssub.s32 %s21, 2
      %s37 = sadd.s32 1, %s30
      %p38 = scmp.ge.s32.totalorder %s37, 1
      %s39 = scalar_select %p38, 0, %s37
      %s40 = sadd.s32 1, %s29
      %s41 = scalar_select %p38, %s40, %s29
      %p42 = scmp.ge.s32.totalorder %s41, 2
      %s43 = scalar_select %p42, 0, %s41
      %s44 = sadd.s32 1, %s28
      %s45 = scalar_select %p42, %s44, %s28
      %p46 = scmp.ge.s32.totalorder %s45, 1
      %s47 = scalar_select %p46, 0, %s45
      %s48 = ssub.s32 %s29, %s43
      %s49 = ssub.s32 %s30, %s39
      %s50 = sor.u32 %s48, %s49
      %p51 = scmp.eq.s32.totalorder %s50, 0
      %s53 = sadd.s32 %s52, 1
      %s54 = scalar_select %p51, %s52, %s53
      %p57 = pneg %p51
      %p58 = scmp.eq.s32.totalorder %s21, 1
      %p59 = por %p57, %p58
      %p60 = scmp.ne.s32.totalorder %s52, %s55
      %p61 = scmp.eq.s32.totalorder %s21, 0
      %p62 = por %p60, %p61
      %p63 = scmp.ne.s32.totalorder %s52, %s55
      %p64 = scmp.eq.s32.totalorder %s26, 1
      %p65 = por %p63, %p64
      %p66 = scmp.ne.s32.totalorder %s55, %s56
      %p67 = scmp.eq.s32.totalorder %s26, 0
      %p68 = por %p66, %p67
      %p69 = scmp.ne.s32.totalorder %s55, %s56
      %p70 = scmp.eq.s32.totalorder %s27, 1
      %p71 = por %p69, %p70
      %p73 = scmp.ne.s32.totalorder %s56, %s72
      %p74 = scmp.eq.s32.totalorder %s27, 0
      %p75 = por %p73, %p74
      %s77 = sadd.s32 %s76, 1
      %p80 = scmp.eq.s32.totalorder %s21, 1
      %p81 = scmp.ne.s32.totalorder %s76, %s78
      %p82 = scmp.eq.s32.totalorder %s21, 0
      %p83 = por %p81, %p82
      %p84 = scmp.ne.s32.totalorder %s76, %s78
      %p85 = scmp.eq.s32.totalorder %s26, 1
      %p86 = por %p84, %p85
      %p87 = scmp.ne.s32.totalorder %s78, %s79
      %p88 = scmp.eq.s32.totalorder %s26, 0
      %p89 = por %p87, %p88
      %p90 = scmp.ne.s32.totalorder %s78, %s79
      %p91 = scmp.eq.s32.totalorder %s27, 1
      %p92 = por %p90, %p91
      %p94 = scmp.ne.s32.totalorder %s79, %s93
      %p95 = scmp.eq.s32.totalorder %s27, 0
      %p96 = por %p94, %p95
      %s97 = ssub.s32 %s28, %s47
      %s98 = ssub.s32 %s29, %s43
      %s99 = sor.u32 %s97, %s98
      %s100 = ssub.s32 %s30, %s39
      %s101 = sor.u32 %s99, %s100
      %p102 = scmp.eq.s32.totalorder %s101, 0
      %s104 = sadd.s32 %s103, 1
      %s105 = scalar_select %p102, %s103, %s104
      %p108 = pneg %p102
      %p109 = scmp.eq.s32.totalorder %s21, 1
      %p110 = por %p108, %p109
      %p111 = scmp.ne.s32.totalorder %s103, %s106
      %p112 = scmp.eq.s32.totalorder %s21, 0
      %p113 = por %p111, %p112
      %p114 = scmp.ne.s32.totalorder %s103, %s106
      %p115 = scmp.eq.s32.totalorder %s26, 1
      %p116 = por %p114, %p115
      %p117 = scmp.ne.s32.totalorder %s106, %s107
      %p118 = scmp.eq.s32.totalorder %s26, 0
      %p119 = por %p117, %p118
      %p120 = scmp.ne.s32.totalorder %s106, %s107
      %p121 = scmp.eq.s32.totalorder %s27, 1
      %p122 = por %p120, %p121
      %p124 = scmp.ne.s32.totalorder %s107, %s123
      %p125 = scmp.eq.s32.totalorder %s27, 0
      %p126 = por %p124, %p125
      %s127 = ssub.s32 %s28, %s47
      %s128 = ssub.s32 %s29, %s43
      %s129 = sor.u32 %s127, %s128
      %s130 = ssub.s32 %s30, %s39
      %s131 = sor.u32 %s129, %s130
      %p132 = scmp.eq.s32.totalorder %s131, 0
      %s134 = sadd.s32 %s133, 1
      %s135 = scalar_select %p132, %s133, %s134
      %p138 = pneg %p132
      %p139 = scmp.eq.s32.totalorder %s21, 1
      %p140 = por %p138, %p139
      %p141 = scmp.ne.s32.totalorder %s133, %s136
      %p142 = scmp.eq.s32.totalorder %s21, 0
      %p143 = por %p141, %p142
      %p144 = scmp.ne.s32.totalorder %s133, %s136
      %p145 = scmp.eq.s32.totalorder %s26, 1
      %p146 = por %p144, %p145
      %p147 = scmp.ne.s32.totalorder %s136, %s137
      %p148 = scmp.eq.s32.totalorder %s26, 0
      %p149 = por %p147, %p148
      %p150 = scmp.ne.s32.totalorder %s136, %s137
      %p151 = scmp.eq.s32.totalorder %s27, 1
      %p152 = por %p150, %p151
      %p154 = scmp.ne.s32.totalorder %s137, %s153
      %p155 = scmp.eq.s32.totalorder %s27, 0
      %p156 = por %p154, %p155
      %s157 = ssub.s32 %s28, %s47
      %s158 = ssub.s32 %s29, %s43
      %s159 = sor.u32 %s157, %s158
      %s160 = ssub.s32 %s30, %s39
      %s161 = sor.u32 %s159, %s160
      %p162 = scmp.eq.s32.totalorder %s161, 0
      %s164 = sadd.s32 %s163, 1
      %s165 = scalar_select %p162, %s163, %s164
      %p168 = pneg %p162
      %p169 = scmp.eq.s32.totalorder %s21, 1
      %p170 = por %p168, %p169
      %p171 = scmp.ne.s32.totalorder %s163, %s166
      %p172 = scmp.eq.s32.totalorder %s21, 0
      %p173 = por %p171, %p172
      %p174 = scmp.ne.s32.totalorder %s163, %s166
      %p175 = scmp.eq.s32.totalorder %s26, 1
      %p176 = por %p174, %p175
      %p177 = scmp.ne.s32.totalorder %s166, %s167
      %p178 = scmp.eq.s32.totalorder %s26, 0
      %p179 = por %p177, %p178
      %p180 = scmp.ne.s32.totalorder %s166, %s167
      %p181 = scmp.eq.s32.totalorder %s27, 1
      %p182 = por %p180, %p181
      %p184 = scmp.ne.s32.totalorder %s167, %s183
      %p185 = scmp.eq.s32.totalorder %s27, 0
      %p186 = por %p184, %p185
      %s187 = ssub.s32 %s28, %s47
      %s188 = ssub.s32 %s29, %s43
      %s189 = sor.u32 %s187, %s188
      %s190 = ssub.s32 %s30, %s39
      %s191 = sor.u32 %s189, %s190
      %p192 = scmp.eq.s32.totalorder %s191, 0
      %s194 = sadd.s32 %s193, 1
      %s195 = scalar_select %p192, %s193, %s194
      %p198 = pneg %p192
      %p199 = scmp.eq.s32.totalorder %s21, 1
      %p200 = por %p198, %p199
      %p201 = scmp.ne.s32.totalorder %s193, %s196
      %p202 = scmp.eq.s32.totalorder %s21, 0
      %p203 = por %p201, %p202
      %p204 = scmp.ne.s32.totalorder %s193, %s196
      %p205 = scmp.eq.s32.totalorder %s26, 1
      %p206 = por %p204, %p205
      %p207 = scmp.ne.s32.totalorder %s196, %s197
      %p208 = scmp.eq.s32.totalorder %s26, 0
      %p209 = por %p207, %p208
      %p210 = scmp.ne.s32.totalorder %s196, %s197
      %p211 = scmp.eq.s32.totalorder %s27, 1
      %p212 = por %p210, %p211
      %p214 = scmp.ne.s32.totalorder %s197, %s213
      %p215 = scmp.eq.s32.totalorder %s27, 0
      %p216 = por %p214, %p215
      %p217 = scmp.le.s32.totalorder 1, %s21
      %p218 = scmp.lt.s32.totalorder %s21, 3
      %p219 = pnand %p217, %p218
      %p220 = pneg %p219
      // Predicated region
      $region9: #{tpu_custom_call.1} parent=5 // pred_check
        _
      $region10: #{tpu_custom_call.1} parent=5 // pred_check_branch
        %222 = sbr.rel (%p219) target = $region12
      $region11: #{tpu_custom_call.1} parent=5 // pred_region
        %s223 = ssub.s32 %s21, 1
        // Predicated region
        $region13: #{tpu_custom_call.1} parent=11 // pred_check
          %p224 = pneg %p89
        $region14: #{tpu_custom_call.1} parent=11 // pred_check_branch
          %226 = sbr.rel (%p224) target = $region16
        $region15: #{tpu_custom_call.1} parent=11 // pred_region
          _
        $region16: #{tpu_custom_call.1} parent=11 // pred_fallthru
          _
      $region12: #{tpu_custom_call.1} parent=5 // pred_fallthru
        _
      %p227 = scmp.lt.s32.totalorder %s21, 2
      // Predicated region
      $region17: #{tpu_custom_call.1} parent=5 // pred_check
        %p228 = pneg %p227
      $region18: #{tpu_custom_call.1} parent=5 // pred_check_branch
        %230 = sbr.rel (%p228) target = $region20
      $region19: #{tpu_custom_call.1} parent=5 // pred_region
        // Predicated region
        $region21: #{tpu_custom_call.1} parent=19 // pred_check
          %p231 = pneg %p62
        $region22: #{tpu_custom_call.1} parent=19 // pred_check_branch
          %233 = sbr.rel (%p231) target = $region24
        $region23: #{tpu_custom_call.1} parent=19 // pred_region
          %s234 = sand.u32 %s52, 1
          %s235 = scalar_lea.sflag [#allocation3], %s234
          %s236 = sand.u32 %s52, 1
          %s237 = smul.addr %s236, 16
          %s238 = scalar_lea.vmem [#allocation2], %s237
          %240 = vsyncadd %s235, 0
          %s241 = smul.addr %s29, 2
          %s242 = sadd.s32 %s30, %s241
          %s243 = smul.addr %s242, 8
          %s244 = scalar_lea.hbm %s0, %s243
          %s245 = sshll.u32 %s244, 4
          %s246 = int_to_ptr.hbm [resolvable:$true] %s245
          %s247 = sshll.u32 %s238, 4
          %s248 = int_to_ptr.vmem [resolvable:$true] %s247
          %253 = dma.hbm_to_vmem [thread:$0]  %s246, 256, %s248, %s235, 128, 128, 8
        $region24: #{tpu_custom_call.1} parent=19 // pred_fallthru
          _
        // Predicated region
        $region25: #{tpu_custom_call.1} parent=19 // pred_check
          %p254 = pneg %p113
        $region26: #{tpu_custom_call.1} parent=19 // pred_check_branch
          %256 = sbr.rel (%p254) target = $region28
        $region27: #{tpu_custom_call.1} parent=19 // pred_region
          %p257 = scmp.lt.s32.totalorder %s28, 0
          %s258 = scalar_select %p257, %s28, 0
          %p259 = scmp.lt.s32.totalorder %s29, 1
          %s260 = scalar_select %p259, %s29, 1
          %p261 = scmp.lt.s32.totalorder %s30, 0
          %s262 = scalar_select %p261, %s30, 0
          %s263 = smul.addr %s260, 8
          %s264 = sadd.s32 %s262, %s263
          %s265 = smul.addr %s258, 16
          %s266 = sadd.s32 %s264, %s265
          %s267 = smul.addr %s266, 8
          %s268 = scalar_lea.vmem %s2, %s267
        $region28: #{tpu_custom_call.1} parent=19 // pred_fallthru
          _
      $region20: #{tpu_custom_call.1} parent=5 // pred_fallthru
        _
      %p269 = scmp.le.s32.totalorder 1, %s21
      %p270 = scmp.lt.s32.totalorder %s21, 3
      %p271 = pnand %p269, %p270
      %p272 = pneg %p271
      // Predicated region
      $region29: #{tpu_custom_call.1} parent=5 // pred_check
        _
      $region30: #{tpu_custom_call.1} parent=5 // pred_check_branch
        %274 = sbr.rel (%p271) target = $region32
      $region31: #{tpu_custom_call.1} parent=5 // pred_region
        %s275 = ssub.s32 %s21, 1
        %s276 = sand.u32 %s55, 1
        %s277 = scalar_lea.sflag [#allocation3], %s276
        %s278 = sand.u32 %s55, 1
        %s279 = smul.addr %s278, 16
        %s280 = scalar_lea.vmem [#allocation2], %s279
        // Predicated region
        $region33: #{tpu_custom_call.1} parent=31 // pred_check
          %p281 = pneg %p68
        $region34: #{tpu_custom_call.1} parent=31 // pred_check_branch
          %283 = sbr.rel (%p281) target = $region36
        $region35: #{tpu_custom_call.1} parent=31 // pred_region
          %285 = dma.done %s277, 256
        $region36: #{tpu_custom_call.1} parent=31 // pred_fallthru
          _
        %s286 = sand.u32 %s55, 1
        %s287 = scalar_lea.sflag [#allocation3], %s286
        %s288 = sand.u32 %s55, 1
        %s289 = smul.addr %s288, 16
        %s290 = scalar_lea.vmem [#allocation2], %s289
        %p291 = pneg %p68
        %p292 = pneg %p65
        %p293 = pneg %p89
        %p294 = pneg %p86
        %p295 = scmp.lt.s32.totalorder %s31, 0
        %s296 = scalar_select %p295, %s31, 0
        %p297 = scmp.lt.s32.totalorder %s32, 1
        %s298 = scalar_select %p297, %s32, 1
        %p299 = scmp.lt.s32.totalorder %s33, 0
        %s300 = scalar_select %p299, %s33, 0
        %s301 = smul.addr %s298, 8
        %s302 = sadd.s32 %s300, %s301
        %s303 = smul.addr %s296, 16
        %s304 = sadd.s32 %s302, %s303
        %s305 = smul.addr %s304, 8
        %s306 = scalar_lea.vmem %s2, %s305
        %p307 = pneg %p119
        %p308 = pneg %p116
        %p309 = pneg %p149
        %p310 = pneg %p146
        %s311 = sand.u32 %s136, 1
        %s312 = scalar_lea.sflag [#allocation4], %s311
        %s313 = sand.u32 %s136, 1
        %s314 = smul.addr %s313, 64
        %s315 = scalar_lea.vmem [#allocation5], %s314
        %p316 = pneg %p179
        %p317 = pneg %p176
        %s318 = sand.u32 %s26, 1
        %s319 = scalar_lea.sflag [#allocation7], %s318
        %s320 = sand.u32 %s166, 1
        %s321 = smul.addr %s320, 64
        %s322 = scalar_lea.vmem [#allocation6], %s321
        %p323 = pneg %p209
        %p324 = pneg %p206
        %s325 = sand.u32 %s26, 1
        %s326 = scalar_lea.sflag [#allocation7], %s325
        %s327 = sand.u32 %s196, 1
        %s328 = smul.addr %s327, 64
        %s329 = scalar_lea.vmem [#allocation8], %s328
        %p330 = scmp.lt.s32.totalorder %s31, 0
        %s331 = scalar_select %p330, %s31, 0
        %p332 = scmp.lt.s32.totalorder %s32, 1
        %s333 = scalar_select %p332, %s32, 1
        %p334 = scmp.lt.s32.totalorder %s33, 0
        %s335 = scalar_select %p334, %s33, 0
        %s336 = smul.addr %s333, 8
        %s337 = sadd.s32 %s335, %s336
        %s338 = smul.addr %s331, 16
        %s339 = sadd.s32 %s337, %s338
        %s340 = smul.addr %s339, 8
        %s341 = scalar_lea.vmem %s2, %s340
        %v342 = vld [vmem:[%s1] sm:$0xff]
        %v343 = vld [vmem:[%s1 + $0x8] sm:$0xff]
        %v344 = vld [vmem:[%s1 + $0x10] sm:$0xff]
        %v345 = vld [vmem:[%s1 + $0x18] sm:$0xff]
        %v346 = vld [vmem:[%s1 + $0x20] sm:$0xff]
        %v347 = vld [vmem:[%s1 + $0x28] sm:$0xff]
        %v348 = vld [vmem:[%s1 + $0x30] sm:$0xff]
        %v349 = vld [vmem:[%s1 + $0x38] sm:$0xff]
        %v350 = vld [vmem:[%s1 + $0x40] sm:$0xff]
        %v351 = vld [vmem:[%s1 + $0x48] sm:$0xff]
        %v352 = vld [vmem:[%s1 + $0x50] sm:$0xff]
        %v353 = vld [vmem:[%s1 + $0x58] sm:$0xff]
        %v354 = vld [vmem:[%s1 + $0x60] sm:$0xff]
        %v355 = vld [vmem:[%s1 + $0x68] sm:$0xff]
        %v356 = vld [vmem:[%s1 + $0x70] sm:$0xff]
        %v357 = vld [vmem:[%s1 + $0x78] sm:$0xff]
        %v358 = vld [vmem:[%s280] sm:$0xff]
        %v359 = vld [vmem:[%s280 + $0x8] sm:$0xff]
        %vm360 = vcmask 130048
        %v362 = vsel %vm360, %v342, 0
        %v365 = vsel %vm360, %v343, 0
        %v368 = vsel %vm360, %v344, 0
        %v371 = vsel %vm360, %v345, 0
        %v374 = vsel %vm360, %v346, 0
        %v377 = vsel %vm360, %v347, 0
        %v380 = vsel %vm360, %v348, 0
        %v383 = vsel %vm360, %v349, 0
        %v386 = vsel %vm360, %v350, 0
        %v389 = vsel %vm360, %v351, 0
        %v392 = vsel %vm360, %v352, 0
        %v395 = vsel %vm360, %v353, 0
        %v398 = vsel %vm360, %v354, 0
        %v401 = vsel %vm360, %v355, 0
        %v404 = vsel %vm360, %v356, 0
        %v407 = vsel %vm360, %v357, 0
        %409 = vmatpush.msra.mxu0 0.0
        %410 = vmatpush.msra.mxu0 0.0
        %411 = vmatpush.msra.mxu0 0.0
        %412 = vmatpush.msra.mxu0 0.0
        %413 = vmatpush.msra.mxu0 0.0
        %414 = vmatpush.msra.mxu0 0.0
        %415 = vmatpush.msra.mxu0 0.0
        %416 = vmatpush.msra.mxu0 0.0
        %417 = vmatpush.msra.mxu0 0.0
        %418 = vmatpush.msra.mxu0 0.0
        %419 = vmatpush.msra.mxu0 0.0
        %420 = vmatpush.msra.mxu0 0.0
        %421 = vmatpush.msra.mxu0 0.0
        %422 = vmatpush.msra.mxu0 0.0
        %v423 = vand.u32 %v359, 4294901760
        %424 = vmatpush.msra.mxu0 %v423
        %v425 = vand.u32 %v358, 4294901760
        %426 = vmatpush.msra.mxu0 %v425
        %v427 = vand.u32 %v362, 4294901760
        %v428 = vsub.f32 %v362, %v427
        %v429 = vand.u32 %v428, 4294901760
        %v430 = vsub.f32 %v428, %v429
        %v431 = vand.u32 %v430, 4294901760
        %432 = vmatmul.f32.gmra.mxu0 %v431
        %v433 = vpop.f32.mrf.mxu0
        %v434 = vadd.f32 0.0, %v433
        %v435 = vand.u32 %v365, 4294901760
        %v436 = vsub.f32 %v365, %v435
        %v437 = vand.u32 %v436, 4294901760
        %v438 = vsub.f32 %v436, %v437
        %v439 = vand.u32 %v438, 4294901760
        %440 = vmatmul.f32.gmra.mxu0 %v439
        %v441 = vpop.f32.mrf.mxu0
        %v442 = vadd.f32 0.0, %v441
        %v443 = vand.u32 %v368, 4294901760
        %v444 = vsub.f32 %v368, %v443
        %v445 = vand.u32 %v444, 4294901760
        %v446 = vsub.f32 %v444, %v445
        %v447 = vand.u32 %v446, 4294901760
        %448 = vmatmul.f32.gmra.mxu0 %v447
        %v449 = vpop.f32.mrf.mxu0
        %v450 = vadd.f32 0.0, %v449
        %v451 = vand.u32 %v371, 4294901760
        %v452 = vsub.f32 %v371, %v451
        %v453 = vand.u32 %v452, 4294901760
        %v454 = vsub.f32 %v452, %v453
        %v455 = vand.u32 %v454, 4294901760
        %456 = vmatmul.f32.gmra.mxu0 %v455
        %v457 = vpop.f32.mrf.mxu0
        %v458 = vadd.f32 0.0, %v457
        %v459 = vand.u32 %v374, 4294901760
        %v460 = vsub.f32 %v374, %v459
        %v461 = vand.u32 %v460, 4294901760
        %v462 = vsub.f32 %v460, %v461
        %v463 = vand.u32 %v462, 4294901760
        %464 = vmatmul.f32.gmra.mxu0 %v463
        %v465 = vpop.f32.mrf.mxu0
        %v466 = vadd.f32 0.0, %v465
        %v467 = vand.u32 %v377, 4294901760
        %v468 = vsub.f32 %v377, %v467
        %v469 = vand.u32 %v468, 4294901760
        %v470 = vsub.f32 %v468, %v469
        %v471 = vand.u32 %v470, 4294901760
        %472 = vmatmul.f32.gmra.mxu0 %v471
        %v473 = vpop.f32.mrf.mxu0
        %v474 = vadd.f32 0.0, %v473
        %v475 = vand.u32 %v380, 4294901760
        %v476 = vsub.f32 %v380, %v475
        %v477 = vand.u32 %v476, 4294901760
        %v478 = vsub.f32 %v476, %v477
        %v479 = vand.u32 %v478, 4294901760
        %480 = vmatmul.f32.gmra.mxu0 %v479
        %v481 = vpop.f32.mrf.mxu0
        %v482 = vadd.f32 0.0, %v481
        %v483 = vand.u32 %v383, 4294901760
        %v484 = vsub.f32 %v383, %v483
        %v485 = vand.u32 %v484, 4294901760
        %v486 = vsub.f32 %v484, %v485
        %v487 = vand.u32 %v486, 4294901760
        %488 = vmatmul.f32.gmra.mxu0 %v487
        %v489 = vpop.f32.mrf.mxu0
        %v490 = vadd.f32 0.0, %v489
        %v491 = vand.u32 %v386, 4294901760
        %v492 = vsub.f32 %v386, %v491
        %v493 = vand.u32 %v492, 4294901760
        %v494 = vsub.f32 %v492, %v493
        %v495 = vand.u32 %v494, 4294901760
        %496 = vmatmul.f32.gmra.mxu0 %v495
        %v497 = vpop.f32.mrf.mxu0
        %v498 = vadd.f32 0.0, %v497
        %v499 = vand.u32 %v389, 4294901760
        %v500 = vsub.f32 %v389, %v499
        %v501 = vand.u32 %v500, 4294901760
        %v502 = vsub.f32 %v500, %v501
        %v503 = vand.u32 %v502, 4294901760
        %504 = vmatmul.f32.gmra.mxu0 %v503
        %v505 = vpop.f32.mrf.mxu0
        %v506 = vadd.f32 0.0, %v505
        %v507 = vand.u32 %v392, 4294901760
        %v508 = vsub.f32 %v392, %v507
        %v509 = vand.u32 %v508, 4294901760
        %v510 = vsub.f32 %v508, %v509
        %v511 = vand.u32 %v510, 4294901760
        %512 = vmatmul.f32.gmra.mxu0 %v511
        %v513 = vpop.f32.mrf.mxu0
        %v514 = vadd.f32 0.0, %v513
        %v515 = vand.u32 %v395, 4294901760
        %v516 = vsub.f32 %v395, %v515
        %v517 = vand.u32 %v516, 4294901760
        %v518 = vsub.f32 %v516, %v517
        %v519 = vand.u32 %v518, 4294901760
        %520 = vmatmul.f32.gmra.mxu0 %v519
        %v521 = vpop.f32.mrf.mxu0
        %v522 = vadd.f32 0.0, %v521
        %v523 = vand.u32 %v398, 4294901760
        %v524 = vsub.f32 %v398, %v523
        %v525 = vand.u32 %v524, 4294901760
        %v526 = vsub.f32 %v524, %v525
        %v527 = vand.u32 %v526, 4294901760
        %528 = vmatmul.f32.gmra.mxu0 %v527
        %v529 = vpop.f32.mrf.mxu0
        %v530 = vadd.f32 0.0, %v529
        %v531 = vand.u32 %v401, 4294901760
        %v532 = vsub.f32 %v401, %v531
        %v533 = vand.u32 %v532, 4294901760
        %v534 = vsub.f32 %v532, %v533
        %v535 = vand.u32 %v534, 4294901760
        %536 = vmatmul.f32.gmra.mxu0 %v535
        %v537 = vpop.f32.mrf.mxu0
        %v538 = vadd.f32 0.0, %v537
        %v539 = vand.u32 %v404, 4294901760
        %v540 = vsub.f32 %v404, %v539
        %v541 = vand.u32 %v540, 4294901760
        %v542 = vsub.f32 %v540, %v541
        %v543 = vand.u32 %v542, 4294901760
        %544 = vmatmul.f32.gmra.mxu0 %v543
        %v545 = vpop.f32.mrf.mxu0
        %v546 = vadd.f32 0.0, %v545
        %v547 = vand.u32 %v407, 4294901760
        %v548 = vsub.f32 %v407, %v547
        %v549 = vand.u32 %v548, 4294901760
        %v550 = vsub.f32 %v548, %v549
        %v551 = vand.u32 %v550, 4294901760
        %552 = vmatmul.f32.gmra.mxu0 %v551
        %v553 = vpop.f32.mrf.mxu0
        %v554 = vadd.f32 0.0, %v553
        %555 = vdwg.mxu0
        %556 = vmatpush.msra.mxu0 0.0
        %557 = vmatpush.msra.mxu0 0.0
        %558 = vmatpush.msra.mxu0 0.0
        %559 = vmatpush.msra.mxu0 0.0
        %560 = vmatpush.msra.mxu0 0.0
        %561 = vmatpush.msra.mxu0 0.0
        %562 = vmatpush.msra.mxu0 0.0
        %563 = vmatpush.msra.mxu0 0.0
        %564 = vmatpush.msra.mxu0 0.0
        %565 = vmatpush.msra.mxu0 0.0
        %566 = vmatpush.msra.mxu0 0.0
        %567 = vmatpush.msra.mxu0 0.0
        %568 = vmatpush.msra.mxu0 0.0
        %569 = vmatpush.msra.mxu0 0.0
        %v570 = vand.u32 %v359, 4294901760
        %v571 = vsub.f32 %v359, %v570
        %v572 = vand.u32 %v571, 4294901760
        %v573 = vsub.f32 %v571, %v572
        %v574 = vand.u32 %v573, 4294901760
        %575 = vmatpush.msra.mxu0 %v574
        %v576 = vand.u32 %v358, 4294901760
        %v577 = vsub.f32 %v358, %v576
        %v578 = vand.u32 %v577, 4294901760
        %v579 = vsub.f32 %v577, %v578
        %v580 = vand.u32 %v579, 4294901760
        %581 = vmatpush.msra.mxu0 %v580
        %v582 = vand.u32 %v362, 4294901760
        %583 = vmatmul.f32.gmra.mxu0 %v582
        %v584 = vpop.f32.mrf.mxu0
        %v585 = vadd.f32 %v434, %v584
        %v586 = vand.u32 %v365, 4294901760
        %587 = vmatmul.f32.gmra.mxu0 %v586
        %v588 = vpop.f32.mrf.mxu0
        %v589 = vadd.f32 %v442, %v588
        %v590 = vand.u32 %v368, 4294901760
        %591 = vmatmul.f32.gmra.mxu0 %v590
        %v592 = vpop.f32.mrf.mxu0
        %v593 = vadd.f32 %v450, %v592
        %v594 = vand.u32 %v371, 4294901760
        %595 = vmatmul.f32.gmra.mxu0 %v594
        %v596 = vpop.f32.mrf.mxu0
        %v597 = vadd.f32 %v458, %v596
        %v598 = vand.u32 %v374, 4294901760
        %599 = vmatmul.f32.gmra.mxu0 %v598
        %v600 = vpop.f32.mrf.mxu0
        %v601 = vadd.f32 %v466, %v600
        %v602 = vand.u32 %v377, 4294901760
        %603 = vmatmul.f32.gmra.mxu0 %v602
        %v604 = vpop.f32.mrf.mxu0
        %v605 = vadd.f32 %v474, %v604
        %v606 = vand.u32 %v380, 4294901760
        %607 = vmatmul.f32.gmra.mxu0 %v606
        %v608 = vpop.f32.mrf.mxu0
        %v609 = vadd.f32 %v482, %v608
        %v610 = vand.u32 %v383, 4294901760
        %611 = vmatmul.f32.gmra.mxu0 %v610
        %v612 = vpop.f32.mrf.mxu0
        %v613 = vadd.f32 %v490, %v612
        %v614 = vand.u32 %v386, 4294901760
        %615 = vmatmul.f32.gmra.mxu0 %v614
        %v616 = vpop.f32.mrf.mxu0
        %v617 = vadd.f32 %v498, %v616
        %v618 = vand.u32 %v389, 4294901760
        %619 = vmatmul.f32.gmra.mxu0 %v618
        %v620 = vpop.f32.mrf.mxu0
        %v621 = vadd.f32 %v506, %v620
        %v622 = vand.u32 %v392, 4294901760
        %623 = vmatmul.f32.gmra.mxu0 %v622
        %v624 = vpop.f32.mrf.mxu0
        %v625 = vadd.f32 %v514, %v624
        %v626 = vand.u32 %v395, 4294901760
        %627 = vmatmul.f32.gmra.mxu0 %v626
        %v628 = vpop.f32.mrf.mxu0
        %v629 = vadd.f32 %v522, %v628
        %v630 = vand.u32 %v398, 4294901760
        %631 = vmatmul.f32.gmra.mxu0 %v630
        %v632 = vpop.f32.mrf.mxu0
        %v633 = vadd.f32 %v530, %v632
        %v634 = vand.u32 %v401, 4294901760
        %635 = vmatmul.f32.gmra.mxu0 %v634
        %v636 = vpop.f32.mrf.mxu0
        %v637 = vadd.f32 %v538, %v636
        %v638 = vand.u32 %v404, 4294901760
        %639 = vmatmul.f32.gmra.mxu0 %v638
        %v640 = vpop.f32.mrf.mxu0
        %v641 = vadd.f32 %v546, %v640
        %v642 = vand.u32 %v407, 4294901760
        %643 = vmatmul.f32.gmra.mxu0 %v642
        %v644 = vpop.f32.mrf.mxu0
        %v645 = vadd.f32 %v554, %v644
        %646 = vdwg.mxu0
        %647 = vmatpush.msra.mxu0 0.0
        %648 = vmatpush.msra.mxu0 0.0
        %649 = vmatpush.msra.mxu0 0.0
        %650 = vmatpush.msra.mxu0 0.0
        %651 = vmatpush.msra.mxu0 0.0
        %652 = vmatpush.msra.mxu0 0.0
        %653 = vmatpush.msra.mxu0 0.0
        %654 = vmatpush.msra.mxu0 0.0
        %655 = vmatpush.msra.mxu0 0.0
        %656 = vmatpush.msra.mxu0 0.0
        %657 = vmatpush.msra.mxu0 0.0
        %658 = vmatpush.msra.mxu0 0.0
        %659 = vmatpush.msra.mxu0 0.0
        %660 = vmatpush.msra.mxu0 0.0
        %v661 = vand.u32 %v359, 4294901760
        %v662 = vsub.f32 %v359, %v661
        %663 = vmatpush.msra.mxu0 %v662
        %v664 = vand.u32 %v358, 4294901760
        %v665 = vsub.f32 %v358, %v664
        %666 = vmatpush.msra.mxu0 %v665
        %v667 = vand.u32 %v362, 4294901760
        %v668 = vsub.f32 %v362, %v667
        %669 = vmatmul.f32.gmra.mxu0 %v668
        %v670 = vpop.f32.mrf.mxu0
        %v671 = vadd.f32 %v585, %v670
        %v672 = vand.u32 %v365, 4294901760
        %v673 = vsub.f32 %v365, %v672
        %674 = vmatmul.f32.gmra.mxu0 %v673
        %v675 = vpop.f32.mrf.mxu0
        %v676 = vadd.f32 %v589, %v675
        %v677 = vand.u32 %v368, 4294901760
        %v678 = vsub.f32 %v368, %v677
        %679 = vmatmul.f32.gmra.mxu0 %v678
        %v680 = vpop.f32.mrf.mxu0
        %v681 = vadd.f32 %v593, %v680
        %v682 = vand.u32 %v371, 4294901760
        %v683 = vsub.f32 %v371, %v682
        %684 = vmatmul.f32.gmra.mxu0 %v683
        %v685 = vpop.f32.mrf.mxu0
        %v686 = vadd.f32 %v597, %v685
        %v687 = vand.u32 %v374, 4294901760
        %v688 = vsub.f32 %v374, %v687
        %689 = vmatmul.f32.gmra.mxu0 %v688
        %v690 = vpop.f32.mrf.mxu0
        %v691 = vadd.f32 %v601, %v690
        %v692 = vand.u32 %v377, 4294901760
        %v693 = vsub.f32 %v377, %v692
        %694 = vmatmul.f32.gmra.mxu0 %v693
        %v695 = vpop.f32.mrf.mxu0
        %v696 = vadd.f32 %v605, %v695
        %v697 = vand.u32 %v380, 4294901760
        %v698 = vsub.f32 %v380, %v697
        %699 = vmatmul.f32.gmra.mxu0 %v698
        %v700 = vpop.f32.mrf.mxu0
        %v701 = vadd.f32 %v609, %v700
        %v702 = vand.u32 %v383, 4294901760
        %v703 = vsub.f32 %v383, %v702
        %704 = vmatmul.f32.gmra.mxu0 %v703
        %v705 = vpop.f32.mrf.mxu0
        %v706 = vadd.f32 %v613, %v705
        %v707 = vand.u32 %v386, 4294901760
        %v708 = vsub.f32 %v386, %v707
        %709 = vmatmul.f32.gmra.mxu0 %v708
        %v710 = vpop.f32.mrf.mxu0
        %v711 = vadd.f32 %v617, %v710
        %v712 = vand.u32 %v389, 4294901760
        %v713 = vsub.f32 %v389, %v712
        %714 = vmatmul.f32.gmra.mxu0 %v713
        %v715 = vpop.f32.mrf.mxu0
        %v716 = vadd.f32 %v621, %v715
        %v717 = vand.u32 %v392, 4294901760
        %v718 = vsub.f32 %v392, %v717
        %719 = vmatmul.f32.gmra.mxu0 %v718
        %v720 = vpop.f32.mrf.mxu0
        %v721 = vadd.f32 %v625, %v720
        %v722 = vand.u32 %v395, 4294901760
        %v723 = vsub.f32 %v395, %v722
        %724 = vmatmul.f32.gmra.mxu0 %v723
        %v725 = vpop.f32.mrf.mxu0
        %v726 = vadd.f32 %v629, %v725
        %v727 = vand.u32 %v398, 4294901760
        %v728 = vsub.f32 %v398, %v727
        %729 = vmatmul.f32.gmra.mxu0 %v728
        %v730 = vpop.f32.mrf.mxu0
        %v731 = vadd.f32 %v633, %v730
        %v732 = vand.u32 %v401, 4294901760
        %v733 = vsub.f32 %v401, %v732
        %734 = vmatmul.f32.gmra.mxu0 %v733
        %v735 = vpop.f32.mrf.mxu0
        %v736 = vadd.f32 %v637, %v735
        %v737 = vand.u32 %v404, 4294901760
        %v738 = vsub.f32 %v404, %v737
        %739 = vmatmul.f32.gmra.mxu0 %v738
        %v740 = vpop.f32.mrf.mxu0
        %v741 = vadd.f32 %v641, %v740
        %v742 = vand.u32 %v407, 4294901760
        %v743 = vsub.f32 %v407, %v742
        %744 = vmatmul.f32.gmra.mxu0 %v743
        %v745 = vpop.f32.mrf.mxu0
        %v746 = vadd.f32 %v645, %v745
        %747 = vdwg.mxu0
        %748 = vmatpush.msra.mxu0 0.0
        %749 = vmatpush.msra.mxu0 0.0
        %750 = vmatpush.msra.mxu0 0.0
        %751 = vmatpush.msra.mxu0 0.0
        %752 = vmatpush.msra.mxu0 0.0
        %753 = vmatpush.msra.mxu0 0.0
        %754 = vmatpush.msra.mxu0 0.0
        %755 = vmatpush.msra.mxu0 0.0
        %756 = vmatpush.msra.mxu0 0.0
        %757 = vmatpush.msra.mxu0 0.0
        %758 = vmatpush.msra.mxu0 0.0
        %759 = vmatpush.msra.mxu0 0.0
        %760 = vmatpush.msra.mxu0 0.0
        %761 = vmatpush.msra.mxu0 0.0
        %v762 = vand.u32 %v359, 4294901760
        %763 = vmatpush.msra.mxu0 %v762
        %v764 = vand.u32 %v358, 4294901760
        %765 = vmatpush.msra.mxu0 %v764
        %v766 = vand.u32 %v362, 4294901760
        %v767 = vsub.f32 %v362, %v766
        %v768 = vand.u32 %v767, 4294901760
        %769 = vmatmul.f32.gmra.mxu0 %v768
        %v770 = vpop.f32.mrf.mxu0
        %v771 = vadd.f32 %v671, %v770
        %v772 = vand.u32 %v365, 4294901760
        %v773 = vsub.f32 %v365, %v772
        %v774 = vand.u32 %v773, 4294901760
        %775 = vmatmul.f32.gmra.mxu0 %v774
        %v776 = vpop.f32.mrf.mxu0
        %v777 = vadd.f32 %v676, %v776
        %v778 = vand.u32 %v368, 4294901760
        %v779 = vsub.f32 %v368, %v778
        %v780 = vand.u32 %v779, 4294901760
        %781 = vmatmul.f32.gmra.mxu0 %v780
        %v782 = vpop.f32.mrf.mxu0
        %v783 = vadd.f32 %v681, %v782
        %v784 = vand.u32 %v371, 4294901760
        %v785 = vsub.f32 %v371, %v784
        %v786 = vand.u32 %v785, 4294901760
        %787 = vmatmul.f32.gmra.mxu0 %v786
        %v788 = vpop.f32.mrf.mxu0
        %v789 = vadd.f32 %v686, %v788
        %v790 = vand.u32 %v374, 4294901760
        %v791 = vsub.f32 %v374, %v790
        %v792 = vand.u32 %v791, 4294901760
        %793 = vmatmul.f32.gmra.mxu0 %v792
        %v794 = vpop.f32.mrf.mxu0
        %v795 = vadd.f32 %v691, %v794
        %v796 = vand.u32 %v377, 4294901760
        %v797 = vsub.f32 %v377, %v796
        %v798 = vand.u32 %v797, 4294901760
        %799 = vmatmul.f32.gmra.mxu0 %v798
        %v800 = vpop.f32.mrf.mxu0
        %v801 = vadd.f32 %v696, %v800
        %v802 = vand.u32 %v380, 4294901760
        %v803 = vsub.f32 %v380, %v802
        %v804 = vand.u32 %v803, 4294901760
        %805 = vmatmul.f32.gmra.mxu0 %v804
        %v806 = vpop.f32.mrf.mxu0
        %v807 = vadd.f32 %v701, %v806
        %v808 = vand.u32 %v383, 4294901760
        %v809 = vsub.f32 %v383, %v808
        %v810 = vand.u32 %v809, 4294901760
        %811 = vmatmul.f32.gmra.mxu0 %v810
        %v812 = vpop.f32.mrf.mxu0
        %v813 = vadd.f32 %v706, %v812
        %v814 = vand.u32 %v386, 4294901760
        %v815 = vsub.f32 %v386, %v814
        %v816 = vand.u32 %v815, 4294901760
        %817 = vmatmul.f32.gmra.mxu0 %v816
        %v818 = vpop.f32.mrf.mxu0
        %v819 = vadd.f32 %v711, %v818
        %v820 = vand.u32 %v389, 4294901760
        %v821 = vsub.f32 %v389, %v820
        %v822 = vand.u32 %v821, 4294901760
        %823 = vmatmul.f32.gmra.mxu0 %v822
        %v824 = vpop.f32.mrf.mxu0
        %v825 = vadd.f32 %v716, %v824
        %v826 = vand.u32 %v392, 4294901760
        %v827 = vsub.f32 %v392, %v826
        %v828 = vand.u32 %v827, 4294901760
        %829 = vmatmul.f32.gmra.mxu0 %v828
        %v830 = vpop.f32.mrf.mxu0
        %v831 = vadd.f32 %v721, %v830
        %v832 = vand.u32 %v395, 4294901760
        %v833 = vsub.f32 %v395, %v832
        %v834 = vand.u32 %v833, 4294901760
        %835 = vmatmul.f32.gmra.mxu0 %v834
        %v836 = vpop.f32.mrf.mxu0
        %v837 = vadd.f32 %v726, %v836
        %v838 = vand.u32 %v398, 4294901760
        %v839 = vsub.f32 %v398, %v838
        %v840 = vand.u32 %v839, 4294901760
        %841 = vmatmul.f32.gmra.mxu0 %v840
        %v842 = vpop.f32.mrf.mxu0
        %v843 = vadd.f32 %v731, %v842
        %v844 = vand.u32 %v401, 4294901760
        %v845 = vsub.f32 %v401, %v844
        %v846 = vand.u32 %v845, 4294901760
        %847 = vmatmul.f32.gmra.mxu0 %v846
        %v848 = vpop.f32.mrf.mxu0
        %v849 = vadd.f32 %v736, %v848
        %v850 = vand.u32 %v404, 4294901760
        %v851 = vsub.f32 %v404, %v850
        %v852 = vand.u32 %v851, 4294901760
        %853 = vmatmul.f32.gmra.mxu0 %v852
        %v854 = vpop.f32.mrf.mxu0
        %v855 = vadd.f32 %v741, %v854
        %v856 = vand.u32 %v407, 4294901760
        %v857 = vsub.f32 %v407, %v856
        %v858 = vand.u32 %v857, 4294901760
        %859 = vmatmul.f32.gmra.mxu0 %v858
        %v860 = vpop.f32.mrf.mxu0
        %v861 = vadd.f32 %v746, %v860
        %862 = vdwg.mxu0
        %863 = vmatpush.msra.mxu0 0.0
        %864 = vmatpush.msra.mxu0 0.0
        %865 = vmatpush.msra.mxu0 0.0
        %866 = vmatpush.msra.mxu0 0.0
        %867 = vmatpush.msra.mxu0 0.0
        %868 = vmatpush.msra.mxu0 0.0
        %869 = vmatpush.msra.mxu0 0.0
        %870 = vmatpush.msra.mxu0 0.0
        %871 = vmatpush.msra.mxu0 0.0
        %872 = vmatpush.msra.mxu0 0.0
        %873 = vmatpush.msra.mxu0 0.0
        %874 = vmatpush.msra.mxu0 0.0
        %875 = vmatpush.msra.mxu0 0.0
        %876 = vmatpush.msra.mxu0 0.0
        %v877 = vand.u32 %v359, 4294901760
        %v878 = vsub.f32 %v359, %v877
        %v879 = vand.u32 %v878, 4294901760
        %880 = vmatpush.msra.mxu0 %v879
        %v881 = vand.u32 %v358, 4294901760
        %v882 = vsub.f32 %v358, %v881
        %v883 = vand.u32 %v882, 4294901760
        %884 = vmatpush.msra.mxu0 %v883
        %v885 = vand.u32 %v362, 4294901760
        %886 = vmatmul.f32.gmra.mxu0 %v885
        %v887 = vpop.f32.mrf.mxu0
        %v888 = vadd.f32 %v771, %v887
        %v889 = vand.u32 %v365, 4294901760
        %890 = vmatmul.f32.gmra.mxu0 %v889
        %v891 = vpop.f32.mrf.mxu0
        %v892 = vadd.f32 %v777, %v891
        %v893 = vand.u32 %v368, 4294901760
        %894 = vmatmul.f32.gmra.mxu0 %v893
        %v895 = vpop.f32.mrf.mxu0
        %v896 = vadd.f32 %v783, %v895
        %v897 = vand.u32 %v371, 4294901760
        %898 = vmatmul.f32.gmra.mxu0 %v897
        %v899 = vpop.f32.mrf.mxu0
        %v900 = vadd.f32 %v789, %v899
        %v901 = vand.u32 %v374, 4294901760
        %902 = vmatmul.f32.gmra.mxu0 %v901
        %v903 = vpop.f32.mrf.mxu0
        %v904 = vadd.f32 %v795, %v903
        %v905 = vand.u32 %v377, 4294901760
        %906 = vmatmul.f32.gmra.mxu0 %v905
        %v907 = vpop.f32.mrf.mxu0
        %v908 = vadd.f32 %v801, %v907
        %v909 = vand.u32 %v380, 4294901760
        %910 = vmatmul.f32.gmra.mxu0 %v909
        %v911 = vpop.f32.mrf.mxu0
        %v912 = vadd.f32 %v807, %v911
        %v913 = vand.u32 %v383, 4294901760
        %914 = vmatmul.f32.gmra.mxu0 %v913
        %v915 = vpop.f32.mrf.mxu0
        %v916 = vadd.f32 %v813, %v915
        %v917 = vand.u32 %v386, 4294901760
        %918 = vmatmul.f32.gmra.mxu0 %v917
        %v919 = vpop.f32.mrf.mxu0
        %v920 = vadd.f32 %v819, %v919
        %v921 = vand.u32 %v389, 4294901760
        %922 = vmatmul.f32.gmra.mxu0 %v921
        %v923 = vpop.f32.mrf.mxu0
        %v924 = vadd.f32 %v825, %v923
        %v925 = vand.u32 %v392, 4294901760
        %926 = vmatmul.f32.gmra.mxu0 %v925
        %v927 = vpop.f32.mrf.mxu0
        %v928 = vadd.f32 %v831, %v927
        %v929 = vand.u32 %v395, 4294901760
        %930 = vmatmul.f32.gmra.mxu0 %v929
        %v931 = vpop.f32.mrf.mxu0
        %v932 = vadd.f32 %v837, %v931
        %v933 = vand.u32 %v398, 4294901760
        %934 = vmatmul.f32.gmra.mxu0 %v933
        %v935 = vpop.f32.mrf.mxu0
        %v936 = vadd.f32 %v843, %v935
        %v937 = vand.u32 %v401, 4294901760
        %938 = vmatmul.f32.gmra.mxu0 %v937
        %v939 = vpop.f32.mrf.mxu0
        %v940 = vadd.f32 %v849, %v939
        %v941 = vand.u32 %v404, 4294901760
        %942 = vmatmul.f32.gmra.mxu0 %v941
        %v943 = vpop.f32.mrf.mxu0
        %v944 = vadd.f32 %v855, %v943
        %v945 = vand.u32 %v407, 4294901760
        %946 = vmatmul.f32.gmra.mxu0 %v945
        %v947 = vpop.f32.mrf.mxu0
        %v948 = vadd.f32 %v861, %v947
        %949 = vdwg.mxu0
        %950 = vmatpush.msra.mxu0 0.0
        %951 = vmatpush.msra.mxu0 0.0
        %952 = vmatpush.msra.mxu0 0.0
        %953 = vmatpush.msra.mxu0 0.0
        %954 = vmatpush.msra.mxu0 0.0
        %955 = vmatpush.msra.mxu0 0.0
        %956 = vmatpush.msra.mxu0 0.0
        %957 = vmatpush.msra.mxu0 0.0
        %958 = vmatpush.msra.mxu0 0.0
        %959 = vmatpush.msra.mxu0 0.0
        %960 = vmatpush.msra.mxu0 0.0
        %961 = vmatpush.msra.mxu0 0.0
        %962 = vmatpush.msra.mxu0 0.0
        %963 = vmatpush.msra.mxu0 0.0
        %v964 = vand.u32 %v359, 4294901760
        %965 = vmatpush.msra.mxu0 %v964
        %v966 = vand.u32 %v358, 4294901760
        %967 = vmatpush.msra.mxu0 %v966
        %v968 = vand.u32 %v362, 4294901760
        %969 = vmatmul.f32.gmra.mxu0 %v968
        %v970 = vpop.f32.mrf.mxu0
        %v971 = vadd.f32 %v888, %v970
        %v972 = vand.u32 %v365, 4294901760
        %973 = vmatmul.f32.gmra.mxu0 %v972
        %v974 = vpop.f32.mrf.mxu0
        %v975 = vadd.f32 %v892, %v974
        %v976 = vand.u32 %v368, 4294901760
        %977 = vmatmul.f32.gmra.mxu0 %v976
        %v978 = vpop.f32.mrf.mxu0
        %v979 = vadd.f32 %v896, %v978
        %v980 = vand.u32 %v371, 4294901760
        %981 = vmatmul.f32.gmra.mxu0 %v980
        %v982 = vpop.f32.mrf.mxu0
        %v983 = vadd.f32 %v900, %v982
        %v984 = vand.u32 %v374, 4294901760
        %985 = vmatmul.f32.gmra.mxu0 %v984
        %v986 = vpop.f32.mrf.mxu0
        %v987 = vadd.f32 %v904, %v986
        %v988 = vand.u32 %v377, 4294901760
        %989 = vmatmul.f32.gmra.mxu0 %v988
        %v990 = vpop.f32.mrf.mxu0
        %v991 = vadd.f32 %v908, %v990
        %v992 = vand.u32 %v380, 4294901760
        %993 = vmatmul.f32.gmra.mxu0 %v992
        %v994 = vpop.f32.mrf.mxu0
        %v995 = vadd.f32 %v912, %v994
        %v996 = vand.u32 %v383, 4294901760
        %997 = vmatmul.f32.gmra.mxu0 %v996
        %v998 = vpop.f32.mrf.mxu0
        %v999 = vadd.f32 %v916, %v998
        %v1000 = vand.u32 %v386, 4294901760
        %1001 = vmatmul.f32.gmra.mxu0 %v1000
        %v1002 = vpop.f32.mrf.mxu0
        %v1003 = vadd.f32 %v920, %v1002
        %v1004 = vand.u32 %v389, 4294901760
        %1005 = vmatmul.f32.gmra.mxu0 %v1004
        %v1006 = vpop.f32.mrf.mxu0
        %v1007 = vadd.f32 %v924, %v1006
        %v1008 = vand.u32 %v392, 4294901760
        %1009 = vmatmul.f32.gmra.mxu0 %v1008
        %v1010 = vpop.f32.mrf.mxu0
        %v1011 = vadd.f32 %v928, %v1010
        %v1012 = vand.u32 %v395, 4294901760
        %1013 = vmatmul.f32.gmra.mxu0 %v1012
        %v1014 = vpop.f32.mrf.mxu0
        %v1015 = vadd.f32 %v932, %v1014
        %v1016 = vand.u32 %v398, 4294901760
        %1017 = vmatmul.f32.gmra.mxu0 %v1016
        %v1018 = vpop.f32.mrf.mxu0
        %v1019 = vadd.f32 %v936, %v1018
        %v1020 = vand.u32 %v401, 4294901760
        %1021 = vmatmul.f32.gmra.mxu0 %v1020
        %v1022 = vpop.f32.mrf.mxu0
        %v1023 = vadd.f32 %v940, %v1022
        %v1024 = vand.u32 %v404, 4294901760
        %1025 = vmatmul.f32.gmra.mxu0 %v1024
        %v1026 = vpop.f32.mrf.mxu0
        %v1027 = vadd.f32 %v944, %v1026
        %v1028 = vand.u32 %v407, 4294901760
        %1029 = vmatmul.f32.gmra.mxu0 %v1028
        %v1030 = vpop.f32.mrf.mxu0
        %v1031 = vadd.f32 %v948, %v1030
        %1032 = vdwg.mxu0
        %v1033 = vmul.f32 %v1003, 0.5
        %v1034 = vmul.f32 %v1007, 0.5
        %v1035 = vmul.f32 %v1011, 0.5
        %v1036 = vmul.f32 %v1015, 0.5
        %v1037 = vmul.f32 %v1019, 0.5
        %v1038 = vmul.f32 %v1023, 0.5
        %v1039 = vmul.f32 %v1027, 0.5
        %v1040 = vmul.f32 %v1031, 0.5
        %v1041 = vmul.f32 %v1033, 1.442695
        %v1042 = vpow.pop %v1041
        %v1043 = vmul.f32 %v1034, 1.442695
        %v1044 = vpow.pop %v1043
        %v1045 = vmul.f32 %v1035, 1.442695
        %v1046 = vpow.pop %v1045
        %v1047 = vmul.f32 %v1036, 1.442695
        %v1048 = vpow.pop %v1047
        %v1049 = vmul.f32 %v1037, 1.442695
        %v1050 = vpow.pop %v1049
        %v1051 = vmul.f32 %v1038, 1.442695
        %v1052 = vpow.pop %v1051
        %v1053 = vmul.f32 %v1039, 1.442695
        %v1054 = vpow.pop %v1053
        %v1055 = vmul.f32 %v1040, 1.442695
        %v1056 = vpow.pop %v1055
        %v1057 = vld [vmem:[%s341] sm:$0xff]
        %v1058 = vld [vmem:[%s341 + $0x8] sm:$0xff]
        %v1059 = vld [vmem:[%s341 + $0x10] sm:$0xff]
        %v1060 = vld [vmem:[%s341 + $0x18] sm:$0xff]
        %v1061 = vld [vmem:[%s341 + $0x20] sm:$0xff]
        %v1062 = vld [vmem:[%s341 + $0x28] sm:$0xff]
        %v1063 = vld [vmem:[%s341 + $0x30] sm:$0xff]
        %v1064 = vld [vmem:[%s341 + $0x38] sm:$0xff]
        %v1065 = vmul.f32 %v1057, %v1042
        %v1066 = vmul.f32 %v1058, %v1044
        %v1067 = vmul.f32 %v1059, %v1046
        %v1068 = vmul.f32 %v1060, %v1048
        %v1069 = vmul.f32 %v1061, %v1050
        %v1070 = vmul.f32 %v1062, %v1052
        %v1071 = vmul.f32 %v1063, %v1054
        %v1072 = vmul.f32 %v1064, %v1056
        %v1073 = vadd.f32 %v1065, %v971
        %v1074 = vadd.f32 %v1066, %v975
        %v1075 = vadd.f32 %v1067, %v979
        %v1076 = vadd.f32 %v1068, %v983
        %v1077 = vadd.f32 %v1069, %v987
        %v1078 = vadd.f32 %v1070, %v991
        %v1079 = vadd.f32 %v1071, %v995
        %v1080 = vadd.f32 %v1072, %v999
        %vm1081 = vcmask 523264
        %1082 = vst.msk [vmem:[%s315] sm:$0xff] %vm1081, %v1073
        %1083 = vst.msk [vmem:[%s315 + $0x8] sm:$0xff] %vm1081, %v1074
        %1084 = vst.msk [vmem:[%s315 + $0x10] sm:$0xff] %vm1081, %v1075
        %1085 = vst.msk [vmem:[%s315 + $0x18] sm:$0xff] %vm1081, %v1076
        %1086 = vst.msk [vmem:[%s315 + $0x20] sm:$0xff] %vm1081, %v1077
        %1087 = vst.msk [vmem:[%s315 + $0x28] sm:$0xff] %vm1081, %v1078
        %1088 = vst.msk [vmem:[%s315 + $0x30] sm:$0xff] %vm1081, %v1079
        %1089 = vst.msk [vmem:[%s315 + $0x38] sm:$0xff] %vm1081, %v1080
        %1090 = vst.msk [vmem:[%s322] sm:$0xff] %vm1081, %v971
        %1091 = vst.msk [vmem:[%s322 + $0x8] sm:$0xff] %vm1081, %v975
        %1092 = vst.msk [vmem:[%s322 + $0x10] sm:$0xff] %vm1081, %v979
        %1093 = vst.msk [vmem:[%s322 + $0x18] sm:$0xff] %vm1081, %v983
        %1094 = vst.msk [vmem:[%s322 + $0x20] sm:$0xff] %vm1081, %v987
        %1095 = vst.msk [vmem:[%s322 + $0x28] sm:$0xff] %vm1081, %v991
        %1096 = vst.msk [vmem:[%s322 + $0x30] sm:$0xff] %vm1081, %v995
        %1097 = vst.msk [vmem:[%s322 + $0x38] sm:$0xff] %vm1081, %v999
        %1098 = vst.msk [vmem:[%s329] sm:$0xff] %vm1081, %v1003
        %1099 = vst.msk [vmem:[%s329 + $0x8] sm:$0xff] %vm1081, %v1007
        %1100 = vst.msk [vmem:[%s329 + $0x10] sm:$0xff] %vm1081, %v1011
        %1101 = vst.msk [vmem:[%s329 + $0x18] sm:$0xff] %vm1081, %v1015
        %1102 = vst.msk [vmem:[%s329 + $0x20] sm:$0xff] %vm1081, %v1019
        %1103 = vst.msk [vmem:[%s329 + $0x28] sm:$0xff] %vm1081, %v1023
        %1104 = vst.msk [vmem:[%s329 + $0x30] sm:$0xff] %vm1081, %v1027
        %1105 = vst.msk [vmem:[%s329 + $0x38] sm:$0xff] %vm1081, %v1031
        %s1106 = sand.u32 %s136, 1
        %s1107 = scalar_lea.sflag [#allocation4], %s1106
        %s1108 = sand.u32 %s136, 1
        %s1109 = smul.addr %s1108, 64
        %s1110 = scalar_lea.vmem [#allocation5], %s1109
        %s1111 = sand.u32 %s26, 1
        %s1112 = scalar_lea.sflag [#allocation7], %s1111
        %s1113 = sand.u32 %s166, 1
        %s1114 = smul.addr %s1113, 64
        %s1115 = scalar_lea.vmem [#allocation6], %s1114
        %s1116 = sand.u32 %s26, 1
        %s1117 = scalar_lea.sflag [#allocation7], %s1116
        %s1118 = sand.u32 %s196, 1
        %s1119 = smul.addr %s1118, 64
        %s1120 = scalar_lea.vmem [#allocation8], %s1119
        // Predicated region
        $region37: #{tpu_custom_call.1} parent=31 // pred_check
          %p1121 = pneg %p146
        $region38: #{tpu_custom_call.1} parent=31 // pred_check_branch
          %1123 = sbr.rel (%p1121) target = $region40
        $region39: #{tpu_custom_call.1} parent=31 // pred_region
          %1125 = vsyncadd %s1107, 0
          %s1126 = smul.addr %s32, 8
          %s1127 = sadd.s32 %s33, %s1126
          %s1128 = smul.addr %s31, 16
          %s1129 = sadd.s32 %s1127, %s1128
          %s1130 = smul.addr %s1129, 8
          %s1131 = scalar_lea.hbm %s3, %s1130
          %s1132 = sshll.u32 %s1110, 4
          %s1133 = int_to_ptr.vmem [resolvable:$true] %s1132
          %s1134 = sshll.u32 %s1131, 4
          %s1135 = int_to_ptr.hbm [resolvable:$true] %s1134
          %1140 = dma.vmem_to_hbm [thread:$0]  %s1133, 1024, %s1135, %s1107, 128, 128, 8
        $region40: #{tpu_custom_call.1} parent=31 // pred_fallthru
          _
        // Predicated region
        $region41: #{tpu_custom_call.1} parent=31 // pred_check
          %p1141 = pneg %p176
        $region42: #{tpu_custom_call.1} parent=31 // pred_check_branch
          %1143 = sbr.rel (%p1141) target = $region44
        $region43: #{tpu_custom_call.1} parent=31 // pred_region
          %1145 = vsyncadd %s1112, 0
          %s1146 = smul.addr %s32, 8
          %s1147 = sadd.s32 %s33, %s1146
          %s1148 = smul.addr %s31, 16
          %s1149 = sadd.s32 %s1147, %s1148
          %s1150 = smul.addr %s1149, 8
          %s1151 = scalar_lea.hbm %s4, %s1150
          %s1152 = sshll.u32 %s1115, 4
          %s1153 = int_to_ptr.vmem [resolvable:$true] %s1152
          %s1154 = sshll.u32 %s1151, 4
          %s1155 = int_to_ptr.hbm [resolvable:$true] %s1154
          %1160 = dma.vmem_to_hbm [thread:$0]  %s1153, 1024, %s1155, %s1112, 128, 128, 8
        $region44: #{tpu_custom_call.1} parent=31 // pred_fallthru
          _
        // Predicated region
        $region45: #{tpu_custom_call.1} parent=31 // pred_check
          %p1161 = pneg %p206
        $region46: #{tpu_custom_call.1} parent=31 // pred_check_branch
          %1163 = sbr.rel (%p1161) target = $region48
        $region47: #{tpu_custom_call.1} parent=31 // pred_region
          %1165 = vsyncadd %s1117, 0
          %s1166 = smul.addr %s32, 8
          %s1167 = sadd.s32 %s33, %s1166
          %s1168 = smul.addr %s31, 16
          %s1169 = sadd.s32 %s1167, %s1168
          %s1170 = smul.addr %s1169, 8
          %s1171 = scalar_lea.hbm %s5, %s1170
          %s1172 = sshll.u32 %s1120, 4
          %s1173 = int_to_ptr.vmem [resolvable:$true] %s1172
          %s1174 = sshll.u32 %s1171, 4
          %s1175 = int_to_ptr.hbm [resolvable:$true] %s1174
          %1180 = dma.vmem_to_hbm [thread:$0]  %s1173, 1024, %s1175, %s1117, 128, 128, 8
        $region48: #{tpu_custom_call.1} parent=31 // pred_fallthru
          _
      $region32: #{tpu_custom_call.1} parent=5 // pred_fallthru
        _
      %p1181 = scmp.le.s32.totalorder 2, %s21
      // Predicated region
      $region49: #{tpu_custom_call.1} parent=5 // pred_check
        %p1182 = pneg %p1181
      $region50: #{tpu_custom_call.1} parent=5 // pred_check_branch
        %1184 = sbr.rel (%p1182) target = $region52
      $region51: #{tpu_custom_call.1} parent=5 // pred_region
        %s1185 = ssub.s32 %s21, 2
        // Predicated region
        $region53: #{tpu_custom_call.1} parent=51 // pred_check
          %p1186 = pneg %p152
        $region54: #{tpu_custom_call.1} parent=51 // pred_check_branch
          %1188 = sbr.rel (%p1186) target = $region56
        $region55: #{tpu_custom_call.1} parent=51 // pred_region
          %s1189 = sand.u32 %s137, 1
          %s1190 = scalar_lea.sflag [#allocation4], %s1189
          %s1191 = sand.u32 %s137, 1
          %s1192 = smul.addr %s1191, 64
          %s1193 = scalar_lea.vmem [#allocation5], %s1192
          %1195 = dma.done %s1190, 1024
        $region56: #{tpu_custom_call.1} parent=51 // pred_fallthru
          _
        // Predicated region
        $region57: #{tpu_custom_call.1} parent=51 // pred_check
          %p1196 = pneg %p182
        $region58: #{tpu_custom_call.1} parent=51 // pred_check_branch
          %1198 = sbr.rel (%p1196) target = $region60
        $region59: #{tpu_custom_call.1} parent=51 // pred_region
          %s1199 = sand.u32 %s27, 1
          %s1200 = scalar_lea.sflag [#allocation7], %s1199
          %s1201 = sand.u32 %s167, 1
          %s1202 = smul.addr %s1201, 64
          %s1203 = scalar_lea.vmem [#allocation6], %s1202
          %1205 = dma.done %s1200, 1024
        $region60: #{tpu_custom_call.1} parent=51 // pred_fallthru
          _
        // Predicated region
        $region61: #{tpu_custom_call.1} parent=51 // pred_check
          %p1206 = pneg %p212
        $region62: #{tpu_custom_call.1} parent=51 // pred_check_branch
          %1208 = sbr.rel (%p1206) target = $region64
        $region63: #{tpu_custom_call.1} parent=51 // pred_region
          %s1209 = sand.u32 %s27, 1
          %s1210 = scalar_lea.sflag [#allocation7], %s1209
          %s1211 = sand.u32 %s197, 1
          %s1212 = smul.addr %s1211, 64
          %s1213 = scalar_lea.vmem [#allocation8], %s1212
          %1215 = dma.done %s1210, 1024
        $region64: #{tpu_custom_call.1} parent=51 // pred_fallthru
          _
      $region52: #{tpu_custom_call.1} parent=5 // pred_fallthru
        _
    $region6: #{tpu_custom_call.1} parent=1 // loop_footer
      %s25 = sadd.s32 1, %s21
    $region7: #{tpu_custom_call.1} parent=1 // loop_footer_branch
      %20 = sbr.rel target = $region3
    $region8: #{tpu_custom_call.1} parent=1 // loop_exit
      _
    %1216 = vsyncpa [#allocation3], 1
    %s1217 = scalar_lea.sflag [#allocation3], 1
    %1218 = vsyncpa %s1217, 1
    %1219 = vsyncpa [#allocation4], 1
    %s1220 = scalar_lea.sflag [#allocation4], 1
    %1221 = vsyncpa %s1220, 1
    %1222 = vsyncpa [#allocation7], 1
    %s1223 = scalar_lea.sflag [#allocation7], 1
    %1224 = vsyncpa %s1223, 1

</llo_original>
